<compile_context>
chip_gen: v5e
topology: v5e:2x2
jax: 0.10.0
libtpu: 0.0.40
codegen_flags: <defaults>
</compile_context>

<pallas_src>
import jax
import jax.numpy as jnp
from jax.experimental import pallas as pl
from jax.experimental.pallas import tpu as pltpu

K = 3
EPS = 1e-6
LANE = 512          # lane width of the flattened view (multiple of 128)
MAX_BLOCK_ROWS = 512  # 512 x 512 f32 tile = 1 MiB -> 4 MiB double-buffered in+out


def gaussian_kernel(w_ref, x_ref, o_ref):
    # w_ref: SMEM (3*K,) f32 flattened parameter table
    # x_ref/o_ref: VMEM (block_rows, LANE) tiles
    x = x_ref[...].astype(jnp.float32)
    acc = jnp.zeros_like(x)
    for i in range(K):                       # static unrolled loop over components
        amp = w_ref[i]                       # w[0, i]
        mu = w_ref[K + i]                    # w[1, i]
        sig = w_ref[2 * K + i]               # w[2, i]
        inv = 1.0 / (sig + EPS)              # scalar reciprocal (once per component)
        z = (x - mu) * inv                   # no per-element divide -> EUP kept for exp
        acc = acc + amp * jnp.exp(-(z * z))
    o_ref[...] = acc.astype(o_ref.dtype)


def gaussian_net(x, w):
    """x: any-shape float array, w: (3, K) -> same shape as x."""
    orig_shape = x.shape
    dtype = x.dtype
    n = x.size

    # Row alignment so the (rows, LANE) block respects packed-sublane tiling.
    itemsize = jnp.dtype(dtype).itemsize
    row_align = 8 * (4 // itemsize)          # f32 -> 8, bf16 -> 16, int8 -> 32

    rows = pl.cdiv(n, LANE)
    block_rows = min(MAX_BLOCK_ROWS, ((rows + row_align - 1) // row_align) * row_align)
    padded_rows = ((rows + block_rows - 1) // block_rows) * block_rows
    n_pad = padded_rows * LANE

    x_flat = jnp.ravel(x)
    if n_pad > n:
        x_flat = jnp.pad(x_flat, (0, n_pad - n))
    x2d = x_flat.reshape(padded_rows, LANE)

    w_flat = jnp.ravel(w).astype(jnp.float32)    # 1-D SMEM table, length 3*K

    grid = (padded_rows // block_rows,)
    out2d = pl.pallas_call(
        gaussian_kernel,
        out_shape=jax.ShapeDtypeStruct((padded_rows, LANE), dtype),
        grid=grid,
        in_specs=[
            pl.BlockSpec(memory_space=pltpu.SMEM),                 # w table (full)
            pl.BlockSpec((block_rows, LANE), lambda i: (i, 0)),    # x tile
        ],
        out_specs=pl.BlockSpec((block_rows, LANE), lambda i: (i, 0)),
        compiler_params=pltpu.CompilerParams(
            dimension_semantics=("parallel",),
        ),
    )(w_flat, x2d)

    return out2d.reshape(-1)[:n].reshape(orig_shape)


def gaussian_ref(x, w):
    out = jnp.zeros_like(x)
    for i in range(K):
        out = out + w[0, i] * jnp.exp(-jnp.square((x - w[1, i]) / (w[2, i] + EPS)))
    return out


if __name__ == "__main__":
    key = jax.random.PRNGKey(0)
    kx, kw, kx2 = jax.random.split(key, 3)

    # small deterministic inputs, consistent with the module: (3, k) param table
    w = jax.random.normal(kw, (3, K), dtype=jnp.float32)

    # shape 1: tile-friendly 16 x 128
    x = jax.random.normal(kx, (16, 128), dtype=jnp.float32)
    out = jax.block_until_ready(gaussian_net(x, w))
    ref = gaussian_ref(x, w)
    assert out.shape == x.shape and out.dtype == x.dtype
    assert jnp.allclose(out, ref, atol=1e-5, rtol=1e-5)

    # shape 2: odd shape exercising the pad/reshape path
    x2 = jax.random.normal(kx2, (3, 37), dtype=jnp.float32)
    out2 = jax.block_until_ready(gaussian_net(x2, w))
    ref2 = gaussian_ref(x2, w)
    assert out2.shape == x2.shape
    assert jnp.allclose(out2, ref2, atol=1e-5, rtol=1e-5)

    print("KERNEL_OK")
</pallas_src>

<mosaic_0001>
module attributes {stable_mosaic.version = 11 : i64} {
  func.func @gaussian_kernel(%arg0: i32, %arg1: memref<9xf32, #tpu.memory_space<smem>>, %arg2: memref<8x512xf32, #tpu.memory_space<vmem>>, %arg3: memref<8x512xf32, #tpu.memory_space<vmem>>) attributes {dimension_semantics = [#tpu.dimension_semantics<parallel>], iteration_bounds = array<i64: 1>, scalar_prefetch = 0 : i64, scratch_operands = 0 : i64, tpu.core_type = #tpu.core_type<tc>, window_params = [{transform_indices = @transform_0, window_bounds = array<i64: 9>}, {transform_indices = @transform_1, window_bounds = array<i64: 8, 512>}, {transform_indices = @transform_2, window_bounds = array<i64: 8, 512>}]} {
    %c0 = arith.constant 0 : index
    %c0_0 = arith.constant 0 : index
    %0 = vector.load %arg2[%c0, %c0_0] : memref<8x512xf32, #tpu.memory_space<vmem>>, vector<8x512xf32>
    %cst = arith.constant 0.000000e+00 : f32
    %1 = vector.broadcast %cst : f32 to vector<8x512xf32>
    %c0_1 = arith.constant 0 : index
    %2 = memref.load %arg1[%c0_1] : memref<9xf32, #tpu.memory_space<smem>>
    %c3 = arith.constant 3 : index
    %3 = memref.load %arg1[%c3] : memref<9xf32, #tpu.memory_space<smem>>
    %c6 = arith.constant 6 : index
    %4 = memref.load %arg1[%c6] : memref<9xf32, #tpu.memory_space<smem>>
    %cst_2 = arith.constant 9.99999997E-7 : f32
    %5 = arith.addf %4, %cst_2 : f32
    %cst_3 = arith.constant 1.000000e+00 : f32
    %6 = arith.divf %cst_3, %5 : f32
    %7 = vector.broadcast %3 : f32 to vector<8x512xf32>
    %8 = arith.subf %0, %7 : vector<8x512xf32>
    %9 = vector.broadcast %6 : f32 to vector<8x512xf32>
    %10 = arith.mulf %8, %9 : vector<8x512xf32>
    %11 = arith.mulf %10, %10 : vector<8x512xf32>
    %cst_4 = arith.constant 0.000000e+00 : f32
    %12 = vector.broadcast %cst_4 : f32 to vector<8x512xf32>
    %13 = arith.subf %12, %11 : vector<8x512xf32>
    %14 = math.exp %13 : vector<8x512xf32>
    %15 = vector.broadcast %2 : f32 to vector<8x512xf32>
    %16 = arith.mulf %15, %14 : vector<8x512xf32>
    %17 = arith.addf %1, %16 : vector<8x512xf32>
    %c1 = arith.constant 1 : index
    %18 = memref.load %arg1[%c1] : memref<9xf32, #tpu.memory_space<smem>>
    %c4 = arith.constant 4 : index
    %19 = memref.load %arg1[%c4] : memref<9xf32, #tpu.memory_space<smem>>
    %c7 = arith.constant 7 : index
    %20 = memref.load %arg1[%c7] : memref<9xf32, #tpu.memory_space<smem>>
    %cst_5 = arith.constant 9.99999997E-7 : f32
    %21 = arith.addf %20, %cst_5 : f32
    %cst_6 = arith.constant 1.000000e+00 : f32
    %22 = arith.divf %cst_6, %21 : f32
    %23 = vector.broadcast %19 : f32 to vector<8x512xf32>
    %24 = arith.subf %0, %23 : vector<8x512xf32>
    %25 = vector.broadcast %22 : f32 to vector<8x512xf32>
    %26 = arith.mulf %24, %25 : vector<8x512xf32>
    %27 = arith.mulf %26, %26 : vector<8x512xf32>
    %cst_7 = arith.constant 0.000000e+00 : f32
    %28 = vector.broadcast %cst_7 : f32 to vector<8x512xf32>
    %29 = arith.subf %28, %27 : vector<8x512xf32>
    %30 = math.exp %29 : vector<8x512xf32>
    %31 = vector.broadcast %18 : f32 to vector<8x512xf32>
    %32 = arith.mulf %31, %30 : vector<8x512xf32>
    %33 = arith.addf %17, %32 : vector<8x512xf32>
    %c2 = arith.constant 2 : index
    %34 = memref.load %arg1[%c2] : memref<9xf32, #tpu.memory_space<smem>>
    %c5 = arith.constant 5 : index
    %35 = memref.load %arg1[%c5] : memref<9xf32, #tpu.memory_space<smem>>
    %c8 = arith.constant 8 : index
    %36 = memref.load %arg1[%c8] : memref<9xf32, #tpu.memory_space<smem>>
    %cst_8 = arith.constant 9.99999997E-7 : f32
    %37 = arith.addf %36, %cst_8 : f32
    %cst_9 = arith.constant 1.000000e+00 : f32
    %38 = arith.divf %cst_9, %37 : f32
    %39 = vector.broadcast %35 : f32 to vector<8x512xf32>
    %40 = arith.subf %0, %39 : vector<8x512xf32>
    %41 = vector.broadcast %38 : f32 to vector<8x512xf32>
    %42 = arith.mulf %40, %41 : vector<8x512xf32>
    %43 = arith.mulf %42, %42 : vector<8x512xf32>
    %cst_10 = arith.constant 0.000000e+00 : f32
    %44 = vector.broadcast %cst_10 : f32 to vector<8x512xf32>
    %45 = arith.subf %44, %43 : vector<8x512xf32>
    %46 = math.exp %45 : vector<8x512xf32>
    %47 = vector.broadcast %34 : f32 to vector<8x512xf32>
    %48 = arith.mulf %47, %46 : vector<8x512xf32>
    %49 = arith.addf %33, %48 : vector<8x512xf32>
    %c0_11 = arith.constant 0 : index
    %c0_12 = arith.constant 0 : index
    %50 = vector.load %arg3[%c0_11, %c0_12] : memref<8x512xf32, #tpu.memory_space<vmem>>, vector<8x512xf32>
    tpu.vector_store %arg3[%c0_11, %c0_12], %49 {strides = array<i32>} : memref<8x512xf32, #tpu.memory_space<vmem>>, vector<8x512xf32>,
    return
  }
  func.func @transform_0(%arg0: i32) -> i32 {
    %c0_i32 = arith.constant 0 : i32
    %c0_i32_0 = arith.constant 0 : i32
    return %c0_i32 : i32
  }
  func.func @transform_1(%arg0: i32) -> (i32, i32) {
    %c0_i32 = arith.constant 0 : i32
    %c0_i32_0 = arith.constant 0 : i32
    return %arg0, %c0_i32 : i32, i32
  }
  func.func @transform_2(%arg0: i32) -> (i32, i32) {
    %c0_i32 = arith.constant 0 : i32
    %c0_i32_0 = arith.constant 0 : i32
    return %arg0, %c0_i32 : i32, i32
  }
}

</mosaic_0001>

<llo_original>
// kernel: tpu_custom_call.1
$region0: #{tpu_custom_call.1}
  #allocation0 [shape = 'u32[]', space=smem, size = 0x4, offset = 0x4, fixed_abs, tag = 'smem constant byte address 0x4 - core index']
  #allocation1 [shape = 'u32[72,128]{1,0:T(1,128)}', space=vmem, size = 0x9000, scoped, tag = 'internal scratch']
  %s0 = inlined_call_operand.hbm [shape: f32[9], index: 0, kind: input, shape index: {}]
  %s1 = inlined_call_operand.hbm [shape: f32[8,512], index: 1, kind: input, shape index: {}]
  %s2 = inlined_call_operand.hbm [shape: f32[8,512], index: 2, kind: output, shape index: {}]
  %s3 = sld [smem:[#allocation0]]
  $region26: #{tpu_custom_call.1} parent=0
    _
  %s5 = ssub.s32 1, %s3
  %s6 = scalar_select 0, %s5, %s3
  $region1: #{tpu_custom_call.1} parent=0
    #allocation2 [shape = 'u8[512]{0}', space=smem, size = 0x200, scoped, tag = 'input window, operand 0, single buffered']
    #allocation3 [shape = 's32[1]{0}', space=sflag, size = 0x4, scoped, tag = 'scoped memory for tpu_custom_call.1']
    #allocation4 [shape = 's32[1]{0}', space=sflag, size = 0x4, scoped, tag = 'scoped memory for tpu_custom_call.1']
    #allocation5 [shape = 's32[1]{0}', space=sflag, size = 0x4, scoped, tag = 'scoped memory for tpu_custom_call.1']
    #allocation6 [shape = 'u8[16384]{0}', space=vmem, size = 0x4000, scoped, tag = 'input window, operand 1, single buffered']
    #allocation7 [shape = 'u8[16384]{0}', space=vmem, size = 0x4000, scoped, tag = 'output window, operand 0, single buffered']
    %7 = vsyncpa [#allocation5], 0
    %8 = vsyncpa [#allocation3], 0
    %9 = vsyncpa [#allocation4], 0
    // Predicated region
    $region2: #{tpu_custom_call.1} parent=1 // pred_check
      _
    $region3: #{tpu_custom_call.1} parent=1 // pred_check_branch
      %11 = sbr.rel (0) target = $region5
    $region4: #{tpu_custom_call.1} parent=1 // pred_region
      %13 = vsyncadd [#allocation5], 0
      %s15 = sshll.u32 %s0, 4
      %s16 = int_to_ptr.hbm [resolvable:$true] %s15
      %18 = dma.hbm_to_smem %s16, 16, [#allocation2], [#allocation5]
    $region5: #{tpu_custom_call.1} parent=1 // pred_fallthru
      _
    // Predicated region
    $region6: #{tpu_custom_call.1} parent=1 // pred_check
      _
    $region7: #{tpu_custom_call.1} parent=1 // pred_check_branch
      %20 = sbr.rel (0) target = $region9
    $region8: #{tpu_custom_call.1} parent=1 // pred_region
      %22 = vsyncadd [#allocation3], 0
      %s24 = sshll.u32 %s1, 4
      %s25 = int_to_ptr.hbm [resolvable:$true] %s24
      %s26 = sshll.u32 [#allocation6], 4
      %s27 = int_to_ptr.vmem [resolvable:$true] %s26
      %29 = dma.hbm_to_vmem [thread:$0]  %s25, 512, %s27, [#allocation3]
    $region9: #{tpu_custom_call.1} parent=1 // pred_fallthru
      _
    // Predicated region
    $region10: #{tpu_custom_call.1} parent=1 // pred_check
      _
    $region11: #{tpu_custom_call.1} parent=1 // pred_check_branch
      %31 = sbr.rel (0) target = $region13
    $region12: #{tpu_custom_call.1} parent=1 // pred_region
      %33 = dma.done [#allocation5], 16
    $region13: #{tpu_custom_call.1} parent=1 // pred_fallthru
      _
    // Predicated region
    $region14: #{tpu_custom_call.1} parent=1 // pred_check
      _
    $region15: #{tpu_custom_call.1} parent=1 // pred_check_branch
      %35 = sbr.rel (0) target = $region17
    $region16: #{tpu_custom_call.1} parent=1 // pred_region
      %37 = dma.done [#allocation3], 512
    $region17: #{tpu_custom_call.1} parent=1 // pred_fallthru
      _
    %38 = sfence
    %v39 = vld [vmem:[#allocation6] sm:$0xff]
    %v40 = vld [vmem:[#allocation6 + $0x8] sm:$0xff]
    %v41 = vld [vmem:[#allocation6 + $0x10] sm:$0xff]
    %v42 = vld [vmem:[#allocation6 + $0x18] sm:$0xff]
    %s43 = sld [smem:[#allocation2]]
    %s44 = sld [smem:[#allocation2 + $0x3]]
    %s45 = sld [smem:[#allocation2 + $0x6]]
    %s46 = sadd.f32 %s45, 1e-06
    %v47 = vstv %s46
    %v48 = vrcp.pop %v47
    %v49 = vmul.f32 %v47, %v48
    %v50 = vsub.f32 1.0, %v49
    %v51 = vmul.f32 %v48, %v50
    %v52 = vadd.f32 %v48, %v51
    %vm53 = vweird.f32 %v47
    %vm54 = vweird.f32 %v48
    %vm55 = vmor %vm53, %vm54
    %v56 = vsel %vm55, %v48, %v52
    %v57 = vand.u32 2147483647, %v47
    %vm58 = vcmp.eq.f32.partialorder %v57, 8.507059e+37
    %v59 = vand.u32 %v47, 2147483648
    %v60 = vor.u32 1.1754944e-38, %v59
    %v61 = vsel %vm58, %v60, %v56
    %s62 = vtos %v61
    %v63 = vstv %s44
    %v64 = vsub.f32 %v39, %v63
    %v65 = vsub.f32 %v40, %v63
    %v66 = vsub.f32 %v41, %v63
    %v67 = vsub.f32 %v42, %v63
    %v68 = vstv %s62
    %v69 = vmul.f32 %v64, %v68
    %v70 = vmul.f32 %v65, %v68
    %v71 = vmul.f32 %v66, %v68
    %v72 = vmul.f32 %v67, %v68
    %v73 = vmul.f32 %v69, %v69
    %v74 = vmul.f32 %v70, %v70
    %v75 = vmul.f32 %v71, %v71
    %v76 = vmul.f32 %v72, %v72
    %v77 = vsub.f32 0.0, %v73
    %v78 = vsub.f32 0.0, %v74
    %v79 = vsub.f32 0.0, %v75
    %v80 = vsub.f32 0.0, %v76
    %v81 = vmul.f32 %v77, 1.442695
    %v82 = vpow.pop %v81
    %v83 = vmul.f32 %v78, 1.442695
    %v84 = vpow.pop %v83
    %v85 = vmul.f32 %v79, 1.442695
    %v86 = vpow.pop %v85
    %v87 = vmul.f32 %v80, 1.442695
    %v88 = vpow.pop %v87
    %v89 = vstv %s43
    %v90 = vmul.f32 %v89, %v82
    %v91 = vmul.f32 %v89, %v84
    %v92 = vmul.f32 %v89, %v86
    %v93 = vmul.f32 %v89, %v88
    %v94 = vadd.f32 %v90, 0.0
    %v95 = vadd.f32 %v91, 0.0
    %v96 = vadd.f32 %v92, 0.0
    %v97 = vadd.f32 %v93, 0.0
    %s98 = sld [smem:[#allocation2 + $0x1]]
    %s99 = sld [smem:[#allocation2 + $0x4]]
    %s100 = sld [smem:[#allocation2 + $0x7]]
    %s101 = sadd.f32 %s100, 1e-06
    %v102 = vstv %s101
    %v103 = vrcp.pop %v102
    %v104 = vmul.f32 %v102, %v103
    %v105 = vsub.f32 1.0, %v104
    %v106 = vmul.f32 %v103, %v105
    %v107 = vadd.f32 %v103, %v106
    %vm108 = vweird.f32 %v102
    %vm109 = vweird.f32 %v103
    %vm110 = vmor %vm108, %vm109
    %v111 = vsel %vm110, %v103, %v107
    %v112 = vand.u32 2147483647, %v102
    %vm113 = vcmp.eq.f32.partialorder %v112, 8.507059e+37
    %v114 = vand.u32 %v102, 2147483648
    %v115 = vor.u32 1.1754944e-38, %v114
    %v116 = vsel %vm113, %v115, %v111
    %s117 = vtos %v116
    %v118 = vstv %s99
    %v119 = vsub.f32 %v39, %v118
    %v120 = vsub.f32 %v40, %v118
    %v121 = vsub.f32 %v41, %v118
    %v122 = vsub.f32 %v42, %v118
    %v123 = vstv %s117
    %v124 = vmul.f32 %v119, %v123
    %v125 = vmul.f32 %v120, %v123
    %v126 = vmul.f32 %v121, %v123
    %v127 = vmul.f32 %v122, %v123
    %v128 = vmul.f32 %v124, %v124
    %v129 = vmul.f32 %v125, %v125
    %v130 = vmul.f32 %v126, %v126
    %v131 = vmul.f32 %v127, %v127
    %v132 = vsub.f32 0.0, %v128
    %v133 = vsub.f32 0.0, %v129
    %v134 = vsub.f32 0.0, %v130
    %v135 = vsub.f32 0.0, %v131
    %v136 = vmul.f32 %v132, 1.442695
    %v137 = vpow.pop %v136
    %v138 = vmul.f32 %v133, 1.442695
    %v139 = vpow.pop %v138
    %v140 = vmul.f32 %v134, 1.442695
    %v141 = vpow.pop %v140
    %v142 = vmul.f32 %v135, 1.442695
    %v143 = vpow.pop %v142
    %v144 = vstv %s98
    %v145 = vmul.f32 %v144, %v137
    %v146 = vmul.f32 %v144, %v139
    %v147 = vmul.f32 %v144, %v141
    %v148 = vmul.f32 %v144, %v143
    %v149 = vadd.f32 %v94, %v145
    %v150 = vadd.f32 %v95, %v146
    %v151 = vadd.f32 %v96, %v147
    %v152 = vadd.f32 %v97, %v148
    %s153 = sld [smem:[#allocation2 + $0x2]]
    %s154 = sld [smem:[#allocation2 + $0x5]]
    %s155 = sld [smem:[#allocation2 + $0x8]]
    %s156 = sadd.f32 %s155, 1e-06
    %v157 = vstv %s156
    %v158 = vrcp.pop %v157
    %v159 = vmul.f32 %v157, %v158
    %v160 = vsub.f32 1.0, %v159
    %v161 = vmul.f32 %v158, %v160
    %v162 = vadd.f32 %v158, %v161
    %vm163 = vweird.f32 %v157
    %vm164 = vweird.f32 %v158
    %vm165 = vmor %vm163, %vm164
    %v166 = vsel %vm165, %v158, %v162
    %v167 = vand.u32 2147483647, %v157
    %vm168 = vcmp.eq.f32.partialorder %v167, 8.507059e+37
    %v169 = vand.u32 %v157, 2147483648
    %v170 = vor.u32 1.1754944e-38, %v169
    %v171 = vsel %vm168, %v170, %v166
    %s172 = vtos %v171
    %v173 = vstv %s154
    %v174 = vsub.f32 %v39, %v173
    %v175 = vsub.f32 %v40, %v173
    %v176 = vsub.f32 %v41, %v173
    %v177 = vsub.f32 %v42, %v173
    %v178 = vstv %s172
    %v179 = vmul.f32 %v174, %v178
    %v180 = vmul.f32 %v175, %v178
    %v181 = vmul.f32 %v176, %v178
    %v182 = vmul.f32 %v177, %v178
    %v183 = vmul.f32 %v179, %v179
    %v184 = vmul.f32 %v180, %v180
    %v185 = vmul.f32 %v181, %v181
    %v186 = vmul.f32 %v182, %v182
    %v187 = vsub.f32 0.0, %v183
    %v188 = vsub.f32 0.0, %v184
    %v189 = vsub.f32 0.0, %v185
    %v190 = vsub.f32 0.0, %v186
    %v191 = vmul.f32 %v187, 1.442695
    %v192 = vpow.pop %v191
    %v193 = vmul.f32 %v188, 1.442695
    %v194 = vpow.pop %v193
    %v195 = vmul.f32 %v189, 1.442695
    %v196 = vpow.pop %v195
    %v197 = vmul.f32 %v190, 1.442695
    %v198 = vpow.pop %v197
    %v199 = vstv %s153
    %v200 = vmul.f32 %v199, %v192
    %v201 = vmul.f32 %v199, %v194
    %v202 = vmul.f32 %v199, %v196
    %v203 = vmul.f32 %v199, %v198
    %v204 = vadd.f32 %v149, %v200
    %v205 = vadd.f32 %v150, %v201
    %v206 = vadd.f32 %v151, %v202
    %v207 = vadd.f32 %v152, %v203
    %208 = vst [vmem:[#allocation7] sm:$0xff] %v204
    %209 = vst [vmem:[#allocation7 + $0x8] sm:$0xff] %v205
    %210 = vst [vmem:[#allocation7 + $0x10] sm:$0xff] %v206
    %211 = vst [vmem:[#allocation7 + $0x18] sm:$0xff] %v207
    // Predicated region
    $region18: #{tpu_custom_call.1} parent=1 // pred_check
      _
    $region19: #{tpu_custom_call.1} parent=1 // pred_check_branch
      %213 = sbr.rel (0) target = $region21
    $region20: #{tpu_custom_call.1} parent=1 // pred_region
      %215 = vsyncadd [#allocation4], 0
      %s217 = sshll.u32 [#allocation7], 4
      %s218 = int_to_ptr.vmem [resolvable:$true] %s217
      %s219 = sshll.u32 %s2, 4
      %s220 = int_to_ptr.hbm [resolvable:$true] %s219
      %222 = dma.vmem_to_hbm [thread:$0]  %s218, 512, %s220, [#allocation4]
    $region21: #{tpu_custom_call.1} parent=1 // pred_fallthru
      _
    // Predicated region
    $region22: #{tpu_custom_call.1} parent=1 // pred_check
      _
    $region23: #{tpu_custom_call.1} parent=1 // pred_check_branch
      %224 = sbr.rel (0) target = $region25
    $region24: #{tpu_custom_call.1} parent=1 // pred_region
      %226 = dma.done [#allocation4], 512
    $region25: #{tpu_custom_call.1} parent=1 // pred_fallthru
      _
    %227 = vsyncpa [#allocation3], 1
    %228 = vsyncpa [#allocation4], 1
    %229 = vsyncpa [#allocation5], 1

</llo_original>
